<compile_context>
chip_gen: v5e
topology: v5e:2x2
jax: 0.10.0
libtpu: 0.0.40
codegen_flags: <defaults>
</compile_context>

<pallas_src>
import jax
import jax.numpy as jnp
from jax import lax
from jax.experimental import pallas as pl
from jax.experimental.pallas import tpu as pltpu


def _round_up(x, m):
    return ((x + m - 1) // m) * m


def _choose_tile_n(n, num_states, tile_n_hint=None):
    """Pick a lane-dense N tile.

    Large enough to amortize per-grid-step overhead, small enough that the
    in-kernel one-hot intermediate [S, TILE_N] f32 stays ~2 MiB, and split so
    that large N still produces >= 2 parallel grid blocks (v7x megacore).
    """
    n128 = _round_up(max(n, 1), 128)
    if tile_n_hint is None:
        onehot_budget = 2 * 1024 * 1024  # bytes for [S, TILE_N] f32
        tile_n_hint = onehot_budget // (4 * max(num_states, 1))
        tile_n_hint = min(max(tile_n_hint, 512), 8192)
    tile_n = min(int(tile_n_hint), n128)
    tile_n = max(128, (tile_n // 128) * 128)
    # Keep >= 2 parallel grid blocks when N allows it (v7x has 2 TensorCores).
    if n128 >= 256 and (n128 // tile_n) < 2:
        tile_n = max(128, ((n128 // 2) // 128) * 128)
    return tile_n


def _reward_gather_kernel(states_ref, actions_ref, rewards_t_ref, out_ref):
    # states_ref / actions_ref : [1, TILE_N] int32   (indices, lane-major)
    # rewards_t_ref            : [A, S]     float32  (resident transposed table)
    # out_ref                  : [1, TILE_N] float32
    a_dim, s_dim = rewards_t_ref.shape
    tile_n = out_ref.shape[1]

    s_idx = states_ref[...]   # [1, TILE_N]
    a_idx = actions_ref[...]  # [1, TILE_N]
    # Match PyTorch negative-index wrapping (cheap: [1, TILE_N] ops).
    s_idx = jnp.where(s_idx < 0, s_idx + s_dim, s_idx)
    a_idx = jnp.where(a_idx < 0, a_idx + a_dim, a_idx)

    # Transposed state one-hot: onehot_s_t[s, n] = (s == states[n]).
    row_iota = lax.broadcasted_iota(jnp.int32, (s_dim, tile_n), 0)
    onehot_s_t = (row_iota == s_idx).astype(jnp.float32)  # [S, TILE_N]

    # Row gather on the MXU: rows_t[a, n] = rewards[states[n], a].
    rows_t = jnp.dot(
        rewards_t_ref[...], onehot_s_t, preferred_element_type=jnp.float32
    )  # [A, TILE_N]

    # Column select: mask by action id, reduce over the (small) sublane axis.
    col_iota = lax.broadcasted_iota(jnp.int32, (a_dim, tile_n), 0)
    picked = jnp.sum(
        jnp.where(col_iota == a_idx, rows_t, 0.0), axis=0, keepdims=True
    )  # [1, TILE_N]

    # Exact sigmoid: exp on the EUP + exact reciprocal (matches torch.sigmoid).
    out_ref[...] = pl.reciprocal(1.0 + jnp.exp(-picked), approx=False)


def reward_model_stepwise_forward(rewards, states, actions, *, tile_n=None):
    """Pallas equivalent of RewardModelStepwise.forward.

    rewards: [num_states, num_actions] float32 (learnable table)
    states : [N] int
    actions: [N] int
    returns: [N] float32 = sigmoid(rewards[states, actions])
    """
    num_states, num_actions = rewards.shape
    n = int(states.shape[0])

    tile_n = _choose_tile_n(n, num_states, tile_n)
    n_pad = _round_up(max(n, 1), tile_n)

    states_i = states.astype(jnp.int32)
    actions_i = actions.astype(jnp.int32)
    if n_pad == n:
        # No padded copy: reshape is metadata-only.
        states_p = states_i.reshape(1, n_pad)
        actions_p = actions_i.reshape(1, n_pad)
    else:
        # Pad only the ragged tail with index 0 (valid); sliced away below.
        pad = n_pad - n
        states_p = jnp.pad(states_i, (0, pad)).reshape(1, n_pad)
        actions_p = jnp.pad(actions_i, (0, pad)).reshape(1, n_pad)

    # One-time transpose outside the kernel keeps the hot path lane-major.
    rewards_t = rewards.astype(jnp.float32).T  # [A, S]

    grid = (n_pad // tile_n,)

    cost = pl.CostEstimate(
        flops=2 * n_pad * num_states * num_actions,
        transcendentals=n_pad,
        bytes_accessed=2 * n_pad * 4 + num_states * num_actions * 4 + n_pad * 4,
    )

    # Explicit VMEM budget: single-buffered table + double-buffered index/out
    # tiles + in-kernel intermediates, with 2x headroom.
    vmem_bytes = (
        num_actions * num_states * 4                 # rewards^T (Buffered(1))
        + 2 * 2 * (tile_n * 4)                       # states/actions, 2 bufs each
        + 2 * (tile_n * 4)                           # output, 2 bufs
        + (num_states + num_actions) * tile_n * 4    # onehot^T + rows^T
    )
    vmem_limit = int(min(96 * 1024 * 1024, max(32 * 1024 * 1024, 2 * vmem_bytes)))

    out = pl.pallas_call(
        _reward_gather_kernel,
        out_shape=jax.ShapeDtypeStruct((1, n_pad), jnp.float32),
        grid=grid,
        in_specs=[
            pl.BlockSpec((1, tile_n), lambda i: (0, i)),   # states
            pl.BlockSpec((1, tile_n), lambda i: (0, i)),   # actions
            pl.BlockSpec(                                  # rewards^T, resident,
                (num_actions, num_states),                 # never re-fetched ->
                lambda i: (0, 0),                          # single-buffered
                pipeline_mode=pl.Buffered(1),
            ),
        ],
        out_specs=pl.BlockSpec((1, tile_n), lambda i: (0, i)),
        compiler_params=pltpu.CompilerParams(
            dimension_semantics=("parallel",),
            vmem_limit_bytes=vmem_limit,
        ),
        cost_estimate=cost,
    )(states_p, actions_p, rewards_t)

    return out[0, :n]


if __name__ == "__main__":
    # Module shapes: rewards is (num_states, num_actions); __init__ uses zeros.
    # Use a deterministic random init so the gather result is non-trivial.
    num_states, num_actions, n = 16, 8, 8

    key = jax.random.PRNGKey(0)
    k_r, k_s, k_a = jax.random.split(key, 3)
    rewards = jax.random.normal(k_r, (num_states, num_actions), dtype=jnp.float32) * 0.5
    states = jax.random.randint(k_s, (n,), 0, num_states, dtype=jnp.int32)
    actions = jax.random.randint(k_a, (n,), 0, num_actions, dtype=jnp.int32)

    out = reward_model_stepwise_forward(rewards, states, actions)
    out = jax.block_until_ready(out)

    # Pure-JAX reference: sigmoid(rewards[states, actions])
    ref = jax.nn.sigmoid(rewards[states, actions])
    assert out.shape == (n,)
    assert jnp.allclose(out, ref, atol=1e-5, rtol=1e-5), (out, ref)

    print("KERNEL_OK")
</pallas_src>

<mosaic_0001>
module attributes {stable_mosaic.version = 11 : i64} {
  func.func @_reward_gather_kernel(%arg0: i32, %arg1: memref<1x128xi32, #tpu.memory_space<vmem>>, %arg2: memref<1x128xi32, #tpu.memory_space<vmem>>, %arg3: memref<8x16xf32, #tpu.memory_space<vmem>>, %arg4: memref<1x128xf32, #tpu.memory_space<vmem>>) attributes {dimension_semantics = [#tpu.dimension_semantics<parallel>], iteration_bounds = array<i64: 1>, scalar_prefetch = 0 : i64, scratch_operands = 0 : i64, tpu.core_type = #tpu.core_type<tc>, window_params = [{transform_indices = @transform_0, window_bounds = array<i64: 1, 128>}, {transform_indices = @transform_1, window_bounds = array<i64: 1, 128>}, {pipeline_mode = #tpu.pipeline_mode<synchronous>, transform_indices = @transform_2, window_bounds = array<i64: 8, 16>}, {transform_indices = @transform_3, window_bounds = array<i64: 1, 128>}]} {
    %c0 = arith.constant 0 : index
    %c0_0 = arith.constant 0 : index
    %0 = vector.load %arg1[%c0, %c0_0] : memref<1x128xi32, #tpu.memory_space<vmem>>, vector<1x128xi32>
    %c0_1 = arith.constant 0 : index
    %c0_2 = arith.constant 0 : index
    %1 = vector.load %arg2[%c0_1, %c0_2] : memref<1x128xi32, #tpu.memory_space<vmem>>, vector<1x128xi32>
    %c0_i32 = arith.constant 0 : i32
    %2 = vector.broadcast %c0_i32 : i32 to vector<1x128xi32>
    %3 = arith.cmpi slt, %0, %2 : vector<1x128xi32>
    %c16_i32 = arith.constant 16 : i32
    %4 = vector.broadcast %c16_i32 : i32 to vector<1x128xi32>
    %5 = arith.addi %0, %4 : vector<1x128xi32>
    %6 = arith.select %3, %5, %0 : vector<1x128xi1>, vector<1x128xi32>
    %c0_i32_3 = arith.constant 0 : i32
    %7 = vector.broadcast %c0_i32_3 : i32 to vector<1x128xi32>
    %8 = arith.cmpi slt, %1, %7 : vector<1x128xi32>
    %c8_i32 = arith.constant 8 : i32
    %9 = vector.broadcast %c8_i32 : i32 to vector<1x128xi32>
    %10 = arith.addi %1, %9 : vector<1x128xi32>
    %11 = arith.select %8, %10, %1 : vector<1x128xi1>, vector<1x128xi32>
    %12 = tpu.iota {dimensions = array<i32: 0>} : vector<16x128xi32>
    %13 = vector.broadcast %6 : vector<1x128xi32> to vector<16x128xi32>
    %14 = arith.cmpi eq, %12, %13 : vector<16x128xi32>
    %15 = arith.extui %14 : vector<16x128xi1> to vector<16x128xi32>
    %16 = arith.sitofp %15 : vector<16x128xi32> to vector<16x128xf32>
    %c0_4 = arith.constant 0 : index
    %c0_5 = arith.constant 0 : index
    %17 = vector.load %arg3[%c0_4, %c0_5] : memref<8x16xf32, #tpu.memory_space<vmem>>, vector<8x16xf32>
    %cst = arith.constant dense<0.000000e+00> : vector<8x128xf32>
    %18 = tpu.matmul %17, %16, %cst {dimension_numbers = #tpu.dot_dimension_numbers<[1], [0], [0], [1], [0, 0, 1, 1], [], []>} : vector<8x16xf32>, vector<16x128xf32>, vector<8x128xf32> -> vector<8x128xf32>
    %19 = tpu.iota {dimensions = array<i32: 0>} : vector<8x128xi32>
    %20 = vector.broadcast %11 : vector<1x128xi32> to vector<8x128xi32>
    %21 = arith.cmpi eq, %19, %20 : vector<8x128xi32>
    %cst_6 = arith.constant 0.000000e+00 : f32
    %22 = vector.broadcast %cst_6 : f32 to vector<8x128xf32>
    %23 = arith.select %21, %18, %22 : vector<8x128xi1>, vector<8x128xf32>
    %cst_7 = arith.constant dense<0.000000e+00> : vector<128xf32>
    %24 = vector.multi_reduction <add>, %23, %cst_7 [0] : vector<8x128xf32> to vector<128xf32>
    %25 = vector.shape_cast %24 : vector<128xf32> to vector<1x128xf32>
    %cst_8 = arith.constant 0.000000e+00 : f32
    %26 = vector.broadcast %cst_8 : f32 to vector<1x128xf32>
    %27 = arith.subf %26, %25 : vector<1x128xf32>
    %28 = math.exp %27 : vector<1x128xf32>
    %cst_9 = arith.constant 1.000000e+00 : f32
    %29 = vector.broadcast %cst_9 : f32 to vector<1x128xf32>
    %30 = arith.addf %29, %28 : vector<1x128xf32>
    %31 = tpu.reciprocal %30 : vector<1x128xf32> -> vector<1x128xf32>
    %c0_10 = arith.constant 0 : index
    %c0_11 = arith.constant 0 : index
    %32 = vector.load %arg4[%c0_10, %c0_11] : memref<1x128xf32, #tpu.memory_space<vmem>>, vector<1x128xf32>
    tpu.vector_store %arg4[%c0_10, %c0_11], %31 {strides = array<i32>} : memref<1x128xf32, #tpu.memory_space<vmem>>, vector<1x128xf32>,
    return
  }
  func.func @transform_0(%arg0: i32) -> (i32, i32) {
    %c0_i32 = arith.constant 0 : i32
    %c0_i32_0 = arith.constant 0 : i32
    return %c0_i32, %arg0 : i32, i32
  }
  func.func @transform_1(%arg0: i32) -> (i32, i32) {
    %c0_i32 = arith.constant 0 : i32
    %c0_i32_0 = arith.constant 0 : i32
    return %c0_i32, %arg0 : i32, i32
  }
  func.func @transform_2(%arg0: i32) -> (i32, i32) {
    %c0_i32 = arith.constant 0 : i32
    %c0_i32_0 = arith.constant 0 : i32
    %c0_i32_1 = arith.constant 0 : i32
    return %c0_i32, %c0_i32_0 : i32, i32
  }
  func.func @transform_3(%arg0: i32) -> (i32, i32) {
    %c0_i32 = arith.constant 0 : i32
    %c0_i32_0 = arith.constant 0 : i32
    return %c0_i32, %arg0 : i32, i32
  }
}

</mosaic_0001>

<llo_original>
// kernel: tpu_custom_call.1
$region0: #{tpu_custom_call.1}
  #allocation0 [shape = 'u32[]', space=smem, size = 0x4, offset = 0x4, fixed_abs, tag = 'smem constant byte address 0x4 - core index']
  #allocation1 [shape = 'u32[72,128]{1,0:T(1,128)}', space=vmem, size = 0x9000, scoped, tag = 'internal scratch']
  %s0 = inlined_call_operand.hbm [shape: s32[1,128], index: 0, kind: input, shape index: {}]
  %s1 = inlined_call_operand.hbm [shape: s32[1,128], index: 1, kind: input, shape index: {}]
  %s2 = inlined_call_operand.hbm [shape: f32[8,16], index: 2, kind: input, shape index: {}]
  %s3 = inlined_call_operand.hbm [shape: f32[1,128], index: 3, kind: output, shape index: {}]
  %s4 = sld [smem:[#allocation0]]
  $region34: #{tpu_custom_call.1} parent=0
    _
  %s6 = ssub.s32 1, %s4
  %s7 = scalar_select 0, %s6, %s4
  $region1: #{tpu_custom_call.1} parent=0
    #allocation2 [shape = 'u8[512]{0}', space=vmem, size = 0x400, scoped, tag = 'input window, operand 0, single buffered']
    #allocation3 [shape = 's32[1]{0}', space=sflag, size = 0x4, scoped, tag = 'scoped memory for tpu_custom_call.1']
    #allocation4 [shape = 's32[1]{0}', space=sflag, size = 0x4, scoped, tag = 'scoped memory for tpu_custom_call.1']
    #allocation5 [shape = 'u8[512]{0}', space=vmem, size = 0x400, scoped, tag = 'input window, operand 1, single buffered']
    #allocation6 [shape = 's32[1]{0}', space=sflag, size = 0x4, scoped, tag = 'scoped memory for tpu_custom_call.1']
    #allocation7 [shape = 'u8[4096]{0}', space=vmem, size = 0x1000, scoped, tag = 'input window, operand 2, single buffered']
    #allocation8 [shape = 'u8[512]{0}', space=vmem, size = 0x400, scoped, tag = 'output window, operand 0, single buffered']
    %8 = vsyncpa [#allocation3], 0
    %9 = vsyncpa [#allocation6], 0
    %10 = vsyncpa [#allocation4], 0
    // Predicated region
    $region2: #{tpu_custom_call.1} parent=1 // pred_check
      _
    $region3: #{tpu_custom_call.1} parent=1 // pred_check_branch
      %12 = sbr.rel (0) target = $region5
    $region4: #{tpu_custom_call.1} parent=1 // pred_region
      %14 = vsyncadd [#allocation3], 0
      %s16 = sshll.u32 %s0, 4
      %s17 = int_to_ptr.hbm [resolvable:$true] %s16
      %s18 = sshll.u32 [#allocation2], 4
      %s19 = int_to_ptr.vmem [resolvable:$true] %s18
      %21 = dma.hbm_to_vmem [thread:$0]  %s17, 16, %s19, [#allocation3]
    $region5: #{tpu_custom_call.1} parent=1 // pred_fallthru
      _
    // Predicated region
    $region6: #{tpu_custom_call.1} parent=1 // pred_check
      _
    $region7: #{tpu_custom_call.1} parent=1 // pred_check_branch
      %23 = sbr.rel (0) target = $region9
    $region8: #{tpu_custom_call.1} parent=1 // pred_region
      %25 = vsyncadd [#allocation6], 0
      %s27 = sshll.u32 %s1, 4
      %s28 = int_to_ptr.hbm [resolvable:$true] %s27
      %s29 = sshll.u32 [#allocation5], 4
      %s30 = int_to_ptr.vmem [resolvable:$true] %s29
      %32 = dma.hbm_to_vmem [thread:$0]  %s28, 16, %s30, [#allocation6]
    $region9: #{tpu_custom_call.1} parent=1 // pred_fallthru
      _
    // Predicated region
    $region10: #{tpu_custom_call.1} parent=1 // pred_check
      _
    $region11: #{tpu_custom_call.1} parent=1 // pred_check_branch
      %34 = sbr.rel (0) target = $region13
    $region12: #{tpu_custom_call.1} parent=1 // pred_region
      %36 = vsyncadd [#allocation6], 0
      %s38 = sshll.u32 %s2, 4
      %s39 = int_to_ptr.hbm [resolvable:$true] %s38
      %s40 = sshll.u32 [#allocation7], 4
      %s41 = int_to_ptr.vmem [resolvable:$true] %s40
      %43 = dma.hbm_to_vmem [thread:$0]  %s39, 128, %s41, [#allocation6]
    $region13: #{tpu_custom_call.1} parent=1 // pred_fallthru
      _
    // Predicated region
    $region14: #{tpu_custom_call.1} parent=1 // pred_check
      _
    $region15: #{tpu_custom_call.1} parent=1 // pred_check_branch
      %45 = sbr.rel (0) target = $region17
    $region16: #{tpu_custom_call.1} parent=1 // pred_region
      %47 = dma.done [#allocation3], 16
    $region17: #{tpu_custom_call.1} parent=1 // pred_fallthru
      _
    // Predicated region
    $region18: #{tpu_custom_call.1} parent=1 // pred_check
      _
    $region19: #{tpu_custom_call.1} parent=1 // pred_check_branch
      %49 = sbr.rel (0) target = $region21
    $region20: #{tpu_custom_call.1} parent=1 // pred_region
      %51 = dma.done [#allocation6], 16
    $region21: #{tpu_custom_call.1} parent=1 // pred_fallthru
      _
    // Predicated region
    $region22: #{tpu_custom_call.1} parent=1 // pred_check
      _
    $region23: #{tpu_custom_call.1} parent=1 // pred_check_branch
      %53 = sbr.rel (0) target = $region25
    $region24: #{tpu_custom_call.1} parent=1 // pred_region
      %55 = dma.done [#allocation6], 128
    $region25: #{tpu_custom_call.1} parent=1 // pred_fallthru
      _
    %v56 = vld [vmem:[#allocation2] sm:$0x1]
    %v57 = vld [vmem:[#allocation5] sm:$0x1]
    %vm58 = vcmp.lt.s32.totalorder %v56, 0
    %v59 = vadd.s32 %v56, 16
    %v60 = vsel %vm58, %v59, %v56
    %vm61 = vcmp.lt.s32.totalorder %v57, 0
    %v62 = vadd.s32 %v57, 8
    %v63 = vsel %vm61, %v62, %v57
    %v64 = vlaneseq
    %v65 = vshrl.u32 %v64, 7
    %v66 = vadd.s32 %v65, 8
    %v67 = vperm.slane %v60, 0
    %vm68 = vcmp.eq.s32.totalorder %v65, %v67
    %vm69 = vcmp.eq.s32.totalorder %v66, %v67
    %v70 = vsel %vm68, 1, 0
    %v71 = vsel %vm69, 1, 0
    %v72 = vcvt.s32.f32 %v70
    %v73 = vcvt.s32.f32 %v71
    %v74 = vld [vmem:[#allocation7] sm:$0xff]
    %vm75 = vcmask 130048
    %v77 = vsel %vm75, %v74, 0
    %79 = vmatpush.msra.mxu0 0.0
    %80 = vmatpush.msra.mxu0 0.0
    %81 = vmatpush.msra.mxu0 0.0
    %82 = vmatpush.msra.mxu0 0.0
    %83 = vmatpush.msra.mxu0 0.0
    %84 = vmatpush.msra.mxu0 0.0
    %85 = vmatpush.msra.mxu0 0.0
    %86 = vmatpush.msra.mxu0 0.0
    %87 = vmatpush.msra.mxu0 0.0
    %88 = vmatpush.msra.mxu0 0.0
    %89 = vmatpush.msra.mxu0 0.0
    %90 = vmatpush.msra.mxu0 0.0
    %91 = vmatpush.msra.mxu0 0.0
    %92 = vmatpush.msra.mxu0 0.0
    %93 = vmatpush.msra.mxu0 %v73
    %94 = vmatpush.msra.mxu0 %v72
    %95 = vmatmul.f32.gmra.mxu0 %v77
    %v96 = vpop.f32.mrf.mxu0
    %v97 = vadd.f32 0.0, %v96
    %98 = vdwg.mxu0
    %v99 = vperm.slane %v63, 0
    %vm100 = vcmp.eq.s32.totalorder %v65, %v99
    %v101 = vsel %vm100, %v97, 0.0
    %v102 = vrot.slane %v101, 4
    %v103 = vadd.f32 %v101, %v102
    %v104 = vrot.slane %v103, 2
    %v105 = vadd.f32 %v103, %v104
    %v106 = vrot.slane %v105, 1
    %v107 = vadd.f32 %v105, %v106
    %v108 = vsub.f32 0.0, %v107
    %v109 = vmul.f32 %v108, 1.442695
    %v110 = vpow.pop %v109
    %v111 = vadd.f32 %v110, 1.0
    %v112 = vrcp.pop %v111
    %v113 = vmul.f32 %v111, %v112
    %v114 = vsub.f32 1.0, %v113
    %v115 = vmul.f32 %v112, %v114
    %v116 = vadd.f32 %v112, %v115
    %vm117 = vweird.f32 %v111
    %vm118 = vweird.f32 %v112
    %vm119 = vmor %vm117, %vm118
    %v120 = vsel %vm119, %v112, %v116
    %v121 = vand.u32 2147483647, %v111
    %vm122 = vcmp.eq.f32.partialorder %v121, 8.507059e+37
    %v123 = vand.u32 %v111, 2147483648
    %v124 = vor.u32 1.1754944e-38, %v123
    %v125 = vsel %vm122, %v124, %v120
    %126 = vst [vmem:[#allocation8] sm:$0x1] %v125
    // Predicated region
    $region26: #{tpu_custom_call.1} parent=1 // pred_check
      _
    $region27: #{tpu_custom_call.1} parent=1 // pred_check_branch
      %128 = sbr.rel (0) target = $region29
    $region28: #{tpu_custom_call.1} parent=1 // pred_region
      %130 = vsyncadd [#allocation4], 0
      %s132 = sshll.u32 [#allocation8], 4
      %s133 = int_to_ptr.vmem [resolvable:$true] %s132
      %s134 = sshll.u32 %s3, 4
      %s135 = int_to_ptr.hbm [resolvable:$true] %s134
      %137 = dma.vmem_to_hbm [thread:$0]  %s133, 16, %s135, [#allocation4]
    $region29: #{tpu_custom_call.1} parent=1 // pred_fallthru
      _
    // Predicated region
    $region30: #{tpu_custom_call.1} parent=1 // pred_check
      _
    $region31: #{tpu_custom_call.1} parent=1 // pred_check_branch
      %139 = sbr.rel (0) target = $region33
    $region32: #{tpu_custom_call.1} parent=1 // pred_region
      %141 = dma.done [#allocation4], 16
    $region33: #{tpu_custom_call.1} parent=1 // pred_fallthru
      _
    %142 = vsyncpa [#allocation3], 1
    %143 = vsyncpa [#allocation6], 1
    %144 = vsyncpa [#allocation4], 1

</llo_original>
